<compile_context>
chip_gen: v5e
topology: v5e:2x2
jax: 0.10.0
libtpu: 0.0.40
codegen_flags: <defaults>
</compile_context>

<pallas_src>
import jax
import jax.numpy as jnp
from jax import lax
from jax.experimental import pallas as pl
from jax.experimental.pallas import tpu as pltpu


def _round_up(x, m):
    return ((x + m - 1) // m) * m


def _vmem_limit(estimate_bytes):
    # Explicit scoped-VMEM budget: floor 32 MiB (v5e default is only 16 MiB),
    # cap 64 MiB (v7x physical VMEM per TensorCore).
    return int(min(max(2 * estimate_bytes + (4 << 20), 32 << 20), 64 << 20))


# ----------------------------------------------------------------------------
# Stage 1: gates_x = x @ W_ih^T + b over the time-major flattened (T*B, F) matrix.
# ----------------------------------------------------------------------------
def _input_proj_kernel(x_ref, w_ref, b_ref, gx_ref):
    gx_ref[...] = (
        jnp.dot(x_ref[...], w_ref[...], preferred_element_type=jnp.float32)
        + b_ref[...]
    )


def gru_input_proj(x2d, w_t, b):
    """x2d: (M, F) bf16, w_t: (F, 3Hp) bf16, b: (3Hp,) f32 -> (M, 3Hp) f32."""
    m, f_in = x2d.shape
    three_hp = w_t.shape[1]

    # Row tiling: pad M up to a tile multiple (bounded VMEM, no full-M fallback).
    tm = min(512, _round_up(m, 8))
    m_pad = _round_up(m, tm)
    if m_pad != m:
        x2d = jnp.pad(x2d, ((0, m_pad - m), (0, 0)))

    # Column tiling over the (lane-aligned) gate axis for large 3Hp.
    # TODO(synk): add K-axis tiling with an f32 accumulator for very large F_in.
    tn = three_hp if three_hp <= 1536 else three_hp // 3

    est = (2 * tm * f_in * x2d.dtype.itemsize      # double-buffered input tiles
           + 2 * tm * tn * 4                        # double-buffered output tiles
           + f_in * tn * w_t.dtype.itemsize         # resident weight tile
           + tn * 4)

    gx = pl.pallas_call(
        _input_proj_kernel,
        out_shape=jax.ShapeDtypeStruct((m_pad, three_hp), jnp.float32),
        grid_spec=pltpu.PrefetchScalarGridSpec(
            num_scalar_prefetch=0,
            grid=(m_pad // tm, three_hp // tn),
            in_specs=[
                pl.BlockSpec((tm, f_in), lambda i, j: (i, 0)),
                pl.BlockSpec((f_in, tn), lambda i, j: (0, j)),
                pl.BlockSpec((1, tn), lambda i, j: (0, j)),
            ],
            out_specs=pl.BlockSpec((tm, tn), lambda i, j: (i, j)),
        ),
        compiler_params=pltpu.CompilerParams(
            dimension_semantics=("parallel", "parallel"),
            vmem_limit_bytes=_vmem_limit(est),
        ),
    )(x2d, w_t, b.reshape(1, three_hp))
    return gx[:m]


# ----------------------------------------------------------------------------
# Stage 2: sequential GRU recurrence, time-chunked, hidden state in VMEM scratch.
# ----------------------------------------------------------------------------
def _recurrent_kernel(gx_ref, whh_ref, bhn_ref, h0_ref, out_ref, hN_ref, h_scratch):
    tc = gx_ref.shape[0]          # timesteps per chunk (static)
    hp = out_ref.shape[-1]        # lane-padded hidden size (static)
    t = pl.program_id(1)

    @pl.when(t == 0)
    def _():
        h_scratch[...] = h0_ref[...]

    def step(s, h):
        gx = gx_ref[s]                                            # (Bc, 3Hp) f32
        gh = jnp.dot(h.astype(whh_ref.dtype), whh_ref[...],
                     preferred_element_type=jnp.float32)          # (Bc, 3Hp) f32
        r = jax.nn.sigmoid(gx[:, 0:hp] + gh[:, 0:hp])
        z = jax.nn.sigmoid(gx[:, hp:2 * hp] + gh[:, hp:2 * hp])
        n = jnp.tanh(gx[:, 2 * hp:] + r * (gh[:, 2 * hp:] + bhn_ref[...]))
        h_new = (1.0 - z) * n + z * h
        out_ref[s] = h_new
        return h_new

    h_last = lax.fori_loop(0, tc, step, h_scratch[...], unroll=True)
    h_scratch[...] = h_last

    @pl.when(t == pl.num_programs(1) - 1)
    def _():
        hN_ref[...] = h_last


def gru_layer(gx_tbm, w_hh_t, b_hn, h0):
    """gx_tbm: (T, B, 3Hp) f32 time-major; w_hh_t: (Hp, 3Hp) bf16; b_hn: (Hp,) f32;
    h0: (B, Hp) f32.  Returns (out (T,B,Hp) f32, h_final (B,Hp) f32)."""
    T, B, three_hp = gx_tbm.shape
    hp = three_hp // 3

    # Time chunk: amortize the ~0.35 us per-grid-step overhead.
    tc = 1
    for c in (32, 16, 8, 4, 2, 1):
        if T % c == 0:
            tc = c
            break

    # Batch chunk: independent recurrences per batch row -> a "parallel" axis that
    # v7x's second TensorCore can take.  Keep the sublane dim a multiple of 8.
    bc = B // 2 if (B % 16 == 0) else B

    est = (2 * tc * bc * three_hp * 4              # double-buffered gx chunks
           + 2 * tc * bc * hp * 4                  # double-buffered out chunks
           + hp * three_hp * w_hh_t.dtype.itemsize # resident recurrent weight
           + 3 * bc * hp * 4                       # h0 / hN / scratch
           + hp * 4)

    out, h_final = pl.pallas_call(
        _recurrent_kernel,
        out_shape=(
            jax.ShapeDtypeStruct((T, B, hp), jnp.float32),
            jax.ShapeDtypeStruct((B, hp), jnp.float32),
        ),
        grid_spec=pltpu.PrefetchScalarGridSpec(
            num_scalar_prefetch=0,
            grid=(B // bc, T // tc),
            in_specs=[
                pl.BlockSpec((tc, bc, three_hp), lambda b, t: (t, b, 0)),
                pl.BlockSpec((hp, three_hp), lambda b, t: (0, 0)),
                pl.BlockSpec((1, hp), lambda b, t: (0, 0)),
                pl.BlockSpec((bc, hp), lambda b, t: (b, 0)),
            ],
            out_specs=[
                pl.BlockSpec((tc, bc, hp), lambda b, t: (t, b, 0)),
                pl.BlockSpec((bc, hp), lambda b, t: (b, 0)),   # resident final h
            ],
            scratch_shapes=[pltpu.VMEM((bc, hp), jnp.float32)],
        ),
        compiler_params=pltpu.CompilerParams(
            # batch axis independent -> parallel; time axis is a true recurrence.
            dimension_semantics=("parallel", "arbitrary"),
            vmem_limit_bytes=_vmem_limit(est),
        ),
    )(gx_tbm, w_hh_t, b_hn.reshape(1, hp), h0)
    return out, h_final


# ----------------------------------------------------------------------------
# Parameter padding helpers (lane-align each gate to Hp = round_up(H, 128)).
# ----------------------------------------------------------------------------
def _pad_gate_cols(w, h, hp):
    """(F, 3h) -> (F, 3hp): each gate column block zero-padded to hp lanes."""
    f = w.shape[0]
    out = jnp.zeros((f, 3 * hp), w.dtype)
    for g in range(3):
        out = out.at[:, g * hp: g * hp + h].set(w[:, g * h:(g + 1) * h])
    return out


def _pad_gate_vec(v, h, hp):
    out = jnp.zeros((3 * hp,), v.dtype)
    for g in range(3):
        out = out.at[g * hp: g * hp + h].set(v[g * h:(g + 1) * h])
    return out


# ----------------------------------------------------------------------------
# Module-level wrapper: equivalent of GRUMemory.forward(x, hidden=None).
# ----------------------------------------------------------------------------
def gru_memory_forward(x, params, hidden=None, matmul_dtype=jnp.bfloat16):
    """x: (B, T, input_size).  params: per layer (w_ih_t, w_hh_t, b_ih, b_hh) with
    weights pre-transposed to (F_in, 3H)/(H, 3H), torch gate order [r|z|n].
    hidden: optional (num_layers, B, H); zeros if None (== init_hidden).
    Returns (output (B, T, H), hidden (num_layers, B, H))."""
    num_layers = len(params)
    B, T, _ = x.shape
    H = params[0][1].shape[0]
    Hp = _round_up(H, 128)

    if hidden is None:
        hidden = jnp.zeros((num_layers, B, H), jnp.float32)
    h0_pad = jnp.pad(hidden.astype(jnp.float32), ((0, 0), (0, 0), (0, Hp - H)))

    # Time-major end-to-end: one transpose here, one at the very end.
    layer_in = jnp.transpose(x.astype(jnp.float32), (1, 0, 2))    # (T, B, F)

    finals = []
    out_tbm = None
    for layer, (w_ih_t, w_hh_t, b_ih, b_hh) in enumerate(params):
        # Pad gates to Hp lanes; fold b_hr/b_hz into the input-side bias; keep
        # b_hn separate (it sits inside the r-multiply); pre-cast weights to bf16.
        w_ih_p = _pad_gate_cols(w_ih_t.astype(jnp.float32), H, Hp)
        if layer > 0:
            # Previous layer's output is already Hp wide (padded lanes are zero).
            w_ih_p = jnp.pad(w_ih_p, ((0, Hp - H), (0, 0)))
        w_hh_p = _pad_gate_cols(w_hh_t.astype(jnp.float32), H, Hp)
        w_hh_p = jnp.pad(w_hh_p, ((0, Hp - H), (0, 0)))

        b_comb = b_ih.astype(jnp.float32) + jnp.concatenate(
            [b_hh[:H], b_hh[H:2 * H], jnp.zeros((H,), jnp.float32)])
        b_comb = _pad_gate_vec(b_comb, H, Hp)
        b_hn = jnp.pad(b_hh[2 * H:3 * H].astype(jnp.float32), (0, Hp - H))

        w_ih_p = w_ih_p.astype(matmul_dtype)
        w_hh_p = w_hh_p.astype(matmul_dtype)

        # Stage 1: one (T*B, F) x (F, 3Hp) matmul for the whole sequence.
        x2d = layer_in.reshape(T * B, layer_in.shape[-1]).astype(matmul_dtype)
        gx = gru_input_proj(x2d, w_ih_p, b_comb).reshape(T, B, 3 * Hp)

        # Stage 2: sequential recurrence over time chunks.
        out_tbm, h_final = gru_layer(gx, w_hh_p, b_hn, h0_pad[layer])
        layer_in = out_tbm                                         # stays time-major
        finals.append(h_final[:, :H])

    out = jnp.transpose(out_tbm[:, :, :H], (1, 0, 2))              # (B, T, H)
    return out, jnp.stack(finals, axis=0)


# ----------------------------------------------------------------------------
# Pure-JAX reference (faithful transcription of torch.nn.GRU, gate order r,z,n)
# ----------------------------------------------------------------------------
def gru_reference(x, params, hidden=None):
    num_layers = len(params)
    B, T, _ = x.shape
    H = params[0][1].shape[0]
    if hidden is None:
        hidden = jnp.zeros((num_layers, B, H), jnp.float32)
    layer_in = x
    finals = []
    for layer, (w_ih_t, w_hh_t, b_ih, b_hh) in enumerate(params):
        def step(h, x_t):
            gx = x_t @ w_ih_t + b_ih
            gh = h @ w_hh_t + b_hh
            r = jax.nn.sigmoid(gx[:, :H] + gh[:, :H])
            z = jax.nn.sigmoid(gx[:, H:2 * H] + gh[:, H:2 * H])
            n = jnp.tanh(gx[:, 2 * H:] + r * gh[:, 2 * H:])
            h_new = (1.0 - z) * n + z * h
            return h_new, h_new

        h_last, ys = jax.lax.scan(step, hidden[layer], jnp.swapaxes(layer_in, 0, 1))
        layer_in = jnp.swapaxes(ys, 0, 1)
        finals.append(h_last)
    return layer_in, jnp.stack(finals, axis=0)


if __name__ == "__main__":
    B, T = 2, 8
    input_size, hidden_size, num_layers = 16, 32, 2

    key = jax.random.PRNGKey(0)
    kx, *kw = jax.random.split(key, 1 + 4 * num_layers)

    x = jax.random.normal(kx, (B, T, input_size), dtype=jnp.float32)

    params = []
    scale = 1.0 / float(hidden_size) ** 0.5
    for layer in range(num_layers):
        f_in = input_size if layer == 0 else hidden_size
        k0, k1, k2, k3 = kw[4 * layer: 4 * layer + 4]
        # PyTorch stores weight_ih_l{k} as (3H, f_in); we keep the transpose.
        w_ih_t = jax.random.uniform(k0, (f_in, 3 * hidden_size), jnp.float32,
                                    -1.0, 1.0) * scale
        w_hh_t = jax.random.uniform(k1, (hidden_size, 3 * hidden_size), jnp.float32,
                                    -1.0, 1.0) * scale
        b_ih = jax.random.uniform(k2, (3 * hidden_size,), jnp.float32,
                                  -1.0, 1.0) * scale
        b_hh = jax.random.uniform(k3, (3 * hidden_size,), jnp.float32,
                                  -1.0, 1.0) * scale
        params.append((w_ih_t, w_hh_t, b_ih, b_hh))

    # hidden=None path == GRUMemory.init_hidden (zeros).
    out, h_n = gru_memory_forward(x, params)
    out = jax.block_until_ready(out)
    h_n = jax.block_until_ready(h_n)

    ref_out, ref_h = gru_reference(x, params)
    assert out.shape == (B, T, hidden_size)
    assert h_n.shape == (num_layers, B, hidden_size)
    # bf16 MXU operands (f32 accumulation, f32 hidden carry) -> loosened tolerance.
    assert jnp.allclose(out, ref_out, rtol=3e-2, atol=3e-2), "output mismatch"
    assert jnp.allclose(h_n, ref_h, rtol=3e-2, atol=3e-2), "hidden mismatch"

    print("KERNEL_OK")
</pallas_src>

<mosaic_0001>
module attributes {stable_mosaic.version = 11 : i64} {
  func.func @_input_proj_kernel(%arg0: i32, %arg1: i32, %arg2: memref<16x16xbf16, #tpu.memory_space<vmem>>, %arg3: memref<16x384xbf16, #tpu.memory_space<vmem>>, %arg4: memref<1x384xf32, #tpu.memory_space<vmem>>, %arg5: memref<16x384xf32, #tpu.memory_space<vmem>>) attributes {dimension_semantics = [#tpu.dimension_semantics<parallel>, #tpu.dimension_semantics<parallel>], iteration_bounds = array<i64: 1, 1>, scalar_prefetch = 0 : i64, scratch_operands = 0 : i64, tpu.core_type = #tpu.core_type<tc>, window_params = [{transform_indices = @transform_0, window_bounds = array<i64: 16, 16>}, {transform_indices = @transform_1, window_bounds = array<i64: 16, 384>}, {transform_indices = @transform_2, window_bounds = array<i64: 1, 384>}, {transform_indices = @transform_3, window_bounds = array<i64: 16, 384>}]} {
    %c0 = arith.constant 0 : index
    %c0_0 = arith.constant 0 : index
    %0 = vector.load %arg2[%c0, %c0_0] : memref<16x16xbf16, #tpu.memory_space<vmem>>, vector<16x16xbf16>
    %c0_1 = arith.constant 0 : index
    %c0_2 = arith.constant 0 : index
    %1 = vector.load %arg3[%c0_1, %c0_2] : memref<16x384xbf16, #tpu.memory_space<vmem>>, vector<16x384xbf16>
    %cst = arith.constant dense<0.000000e+00> : vector<16x384xf32>
    %2 = tpu.matmul %0, %1, %cst {dimension_numbers = #tpu.dot_dimension_numbers<[1], [0], [0], [1], [0, 0, 1, 1], [], []>} : vector<16x16xbf16>, vector<16x384xbf16>, vector<16x384xf32> -> vector<16x384xf32>
    %c0_3 = arith.constant 0 : index
    %c0_4 = arith.constant 0 : index
    %3 = vector.load %arg4[%c0_3, %c0_4] : memref<1x384xf32, #tpu.memory_space<vmem>>, vector<1x384xf32>
    %4 = vector.broadcast %3 : vector<1x384xf32> to vector<16x384xf32>
    %5 = arith.addf %2, %4 : vector<16x384xf32>
    %c0_5 = arith.constant 0 : index
    %c0_6 = arith.constant 0 : index
    %6 = vector.load %arg5[%c0_5, %c0_6] : memref<16x384xf32, #tpu.memory_space<vmem>>, vector<16x384xf32>
    tpu.vector_store %arg5[%c0_5, %c0_6], %5 {strides = array<i32>} : memref<16x384xf32, #tpu.memory_space<vmem>>, vector<16x384xf32>,
    return
  }
  func.func @transform_0(%arg0: i32, %arg1: i32) -> (i32, i32) {
    %c0_i32 = arith.constant 0 : i32
    %c0_i32_0 = arith.constant 0 : i32
    return %arg0, %c0_i32 : i32, i32
  }
  func.func @transform_1(%arg0: i32, %arg1: i32) -> (i32, i32) {
    %c0_i32 = arith.constant 0 : i32
    %c0_i32_0 = arith.constant 0 : i32
    return %c0_i32, %arg1 : i32, i32
  }
  func.func @transform_2(%arg0: i32, %arg1: i32) -> (i32, i32) {
    %c0_i32 = arith.constant 0 : i32
    %c0_i32_0 = arith.constant 0 : i32
    return %c0_i32, %arg1 : i32, i32
  }
  func.func @transform_3(%arg0: i32, %arg1: i32) -> (i32, i32) {
    %c0_i32 = arith.constant 0 : i32
    return %arg0, %arg1 : i32, i32
  }
}

</mosaic_0001>

<llo_original>
// kernel: tpu_custom_call.1
$region0: #{tpu_custom_call.1}
  #allocation0 [shape = 'u32[]', space=smem, size = 0x4, offset = 0x4, fixed_abs, tag = 'smem constant byte address 0x4 - core index']
  #allocation1 [shape = 'u32[72,128]{1,0:T(1,128)}', space=vmem, size = 0x9000, scoped, tag = 'internal scratch']
  %s0 = inlined_call_operand.hbm [shape: bf16[16,16], index: 0, kind: input, shape index: {}]
  %s1 = inlined_call_operand.hbm [shape: bf16[16,384], index: 1, kind: input, shape index: {}]
  %s2 = inlined_call_operand.hbm [shape: f32[1,384], index: 2, kind: input, shape index: {}]
  %s3 = inlined_call_operand.hbm [shape: f32[16,384], index: 3, kind: output, shape index: {}]
  %s4 = sld [smem:[#allocation0]]
  $region34: #{tpu_custom_call.1} parent=0
    _
  %s6 = ssub.s32 1, %s4
  %s7 = scalar_select 0, %s6, %s4
  $region1: #{tpu_custom_call.1} parent=0
    #allocation2 [shape = 'u8[4096]{0}', space=vmem, size = 0x1000, scoped, tag = 'input window, operand 0, single buffered']
    #allocation3 [shape = 's32[1]{0}', space=sflag, size = 0x4, scoped, tag = 'scoped memory for tpu_custom_call.1']
    #allocation4 [shape = 's32[1]{0}', space=sflag, size = 0x4, scoped, tag = 'scoped memory for tpu_custom_call.1']
    #allocation5 [shape = 'u8[12288]{0}', space=vmem, size = 0x3000, scoped, tag = 'input window, operand 1, single buffered']
    #allocation6 [shape = 's32[1]{0}', space=sflag, size = 0x4, scoped, tag = 'scoped memory for tpu_custom_call.1']
    #allocation7 [shape = 'u8[1536]{0}', space=vmem, size = 0x800, scoped, tag = 'input window, operand 2, single buffered']
    #allocation8 [shape = 'u8[24576]{0}', space=vmem, size = 0x6000, scoped, tag = 'output window, operand 0, single buffered']
    %8 = vsyncpa [#allocation3], 0
    %9 = vsyncpa [#allocation6], 0
    %10 = vsyncpa [#allocation4], 0
    // Predicated region
    $region2: #{tpu_custom_call.1} parent=1 // pred_check
      _
    $region3: #{tpu_custom_call.1} parent=1 // pred_check_branch
      %12 = sbr.rel (0) target = $region5
    $region4: #{tpu_custom_call.1} parent=1 // pred_region
      %14 = vsyncadd [#allocation3], 0
      %s15 = sshll.u32 %s0, 4
      %s16 = int_to_ptr.hbm [resolvable:$true] %s15
      %s17 = sshll.u32 [#allocation2], 4
      %s18 = int_to_ptr.vmem [resolvable:$true] %s17
      %23 = dma.hbm_to_vmem [thread:$0]  %s16, 128, %s18, [#allocation3], 64, 64, 4
    $region5: #{tpu_custom_call.1} parent=1 // pred_fallthru
      _
    // Predicated region
    $region6: #{tpu_custom_call.1} parent=1 // pred_check
      _
    $region7: #{tpu_custom_call.1} parent=1 // pred_check_branch
      %25 = sbr.rel (0) target = $region9
    $region8: #{tpu_custom_call.1} parent=1 // pred_region
      %27 = vsyncadd [#allocation6], 0
      %s28 = sshll.u32 %s1, 4
      %s29 = int_to_ptr.hbm [resolvable:$true] %s28
      %s30 = sshll.u32 [#allocation5], 4
      %s31 = int_to_ptr.vmem [resolvable:$true] %s30
      %36 = dma.hbm_to_vmem [thread:$0]  %s29, 384, %s31, [#allocation6], 192, 192, 12
    $region9: #{tpu_custom_call.1} parent=1 // pred_fallthru
      _
    // Predicated region
    $region10: #{tpu_custom_call.1} parent=1 // pred_check
      _
    $region11: #{tpu_custom_call.1} parent=1 // pred_check_branch
      %38 = sbr.rel (0) target = $region13
    $region12: #{tpu_custom_call.1} parent=1 // pred_region
      %40 = vsyncadd [#allocation6], 0
      %s42 = sshll.u32 %s2, 4
      %s43 = int_to_ptr.hbm [resolvable:$true] %s42
      %s44 = sshll.u32 [#allocation7], 4
      %s45 = int_to_ptr.vmem [resolvable:$true] %s44
      %47 = dma.hbm_to_vmem [thread:$0]  %s43, 48, %s45, [#allocation6]
    $region13: #{tpu_custom_call.1} parent=1 // pred_fallthru
      _
    // Predicated region
    $region14: #{tpu_custom_call.1} parent=1 // pred_check
      _
    $region15: #{tpu_custom_call.1} parent=1 // pred_check_branch
      %49 = sbr.rel (0) target = $region17
    $region16: #{tpu_custom_call.1} parent=1 // pred_region
      %51 = dma.done [#allocation3], 128
    $region17: #{tpu_custom_call.1} parent=1 // pred_fallthru
      _
    // Predicated region
    $region18: #{tpu_custom_call.1} parent=1 // pred_check
      _
    $region19: #{tpu_custom_call.1} parent=1 // pred_check_branch
      %53 = sbr.rel (0) target = $region21
    $region20: #{tpu_custom_call.1} parent=1 // pred_region
      %55 = dma.done [#allocation6], 384
    $region21: #{tpu_custom_call.1} parent=1 // pred_fallthru
      _
    // Predicated region
    $region22: #{tpu_custom_call.1} parent=1 // pred_check
      _
    $region23: #{tpu_custom_call.1} parent=1 // pred_check_branch
      %57 = sbr.rel (0) target = $region25
    $region24: #{tpu_custom_call.1} parent=1 // pred_region
      %59 = dma.done [#allocation6], 48
    $region25: #{tpu_custom_call.1} parent=1 // pred_fallthru
      _
    %v61 = vld [vmem:[#allocation2] sm:$0xf]
    %v62 = vld [vmem:[#allocation2 + $0x4] sm:$0xf]
    %v63 = vld [vmem:[#allocation5] sm:$0xff]
    %v64 = vld [vmem:[#allocation5 + $0x8] sm:$0xf]
    %v65 = vld [vmem:[#allocation5 + $0xc] sm:$0xff]
    %v66 = vld [vmem:[#allocation5 + $0x14] sm:$0xf]
    %v67 = vld [vmem:[#allocation7] sm:$0x7]
    %v69 = vperm.slane %v67, 0
    %v70 = vperm.slane %v67, 1
    %v71 = vperm.slane %v67, 2
    %v77 = vunpack.c.l.b16 %v61
    %v78 = vunpack.c.l.b16 %v62
    %v79 = vpack.c.b16 %v78, %v77
    %v84 = vunpack.c.l.b16 %v63
    %v85 = vunpack.c.h.b16 %v63
    %v86 = vunpack.c.l.b16 %v64
    %v87 = vunpack.c.l.b16 %v65
    %v88 = vunpack.c.h.b16 %v65
    %v89 = vunpack.c.l.b16 %v66
    %v90 = vpack.c.b16 %v87, %v84
    %v91 = vpack.c.b16 %v88, %v85
    %v92 = vpack.c.b16 %v89, %v86
    %vm96 = vcmask 130048
    %v98 = vsel %vm96, %v79, 0
    %100 = vmatpush.bf16.msra.mxu0 0
    %101 = vmatpush.bf16.msra.mxu0 0
    %102 = vmatpush.bf16.msra.mxu0 0
    %103 = vmatpush.bf16.msra.mxu0 0
    %104 = vmatpush.bf16.msra.mxu0 0
    %105 = vmatpush.bf16.msra.mxu0 0
    %106 = vmatpush.bf16.msra.mxu0 0
    %107 = vmatpush.bf16.msra.mxu0 %v90
    %108 = vmatmul.bf16.gmra.mxu0 %v98
    %v109 = vpop.f32.mrf.mxu0
    %v110 = vadd.f32 %v69, %v109
    %v111 = vpop.f32.mrf.mxu0
    %v112 = vadd.f32 %v69, %v111
    %113 = vdwg.mxu0
    %114 = vmatpush.bf16.msra.mxu0 0
    %115 = vmatpush.bf16.msra.mxu0 0
    %116 = vmatpush.bf16.msra.mxu0 0
    %117 = vmatpush.bf16.msra.mxu0 0
    %118 = vmatpush.bf16.msra.mxu0 0
    %119 = vmatpush.bf16.msra.mxu0 0
    %120 = vmatpush.bf16.msra.mxu0 0
    %121 = vmatpush.bf16.msra.mxu0 %v91
    %122 = vmatmul.bf16.gmra.mxu0 %v98
    %v123 = vpop.f32.mrf.mxu0
    %v124 = vadd.f32 %v70, %v123
    %v125 = vpop.f32.mrf.mxu0
    %v126 = vadd.f32 %v70, %v125
    %127 = vdwg.mxu0
    %128 = vmatpush.bf16.msra.mxu0 0
    %129 = vmatpush.bf16.msra.mxu0 0
    %130 = vmatpush.bf16.msra.mxu0 0
    %131 = vmatpush.bf16.msra.mxu0 0
    %132 = vmatpush.bf16.msra.mxu0 0
    %133 = vmatpush.bf16.msra.mxu0 0
    %134 = vmatpush.bf16.msra.mxu0 0
    %135 = vmatpush.bf16.msra.mxu0 %v92
    %136 = vmatmul.bf16.gmra.mxu0 %v98
    %v137 = vpop.f32.mrf.mxu0
    %v138 = vadd.f32 %v71, %v137
    %v139 = vpop.f32.mrf.mxu0
    %v140 = vadd.f32 %v71, %v139
    %141 = vdwg.mxu0
    %142 = vst [vmem:[#allocation8] sm:$0xff] %v110
    %143 = vst [vmem:[#allocation8 + $0x8] sm:$0xff] %v124
    %144 = vst [vmem:[#allocation8 + $0x10] sm:$0xff] %v138
    %145 = vst [vmem:[#allocation8 + $0x18] sm:$0xff] %v112
    %146 = vst [vmem:[#allocation8 + $0x20] sm:$0xff] %v126
    %147 = vst [vmem:[#allocation8 + $0x28] sm:$0xff] %v140
    // Predicated region
    $region26: #{tpu_custom_call.1} parent=1 // pred_check
      _
    $region27: #{tpu_custom_call.1} parent=1 // pred_check_branch
      %149 = sbr.rel (0) target = $region29
    $region28: #{tpu_custom_call.1} parent=1 // pred_region
      %151 = vsyncadd [#allocation4], 0
      %s152 = sshll.u32 [#allocation8], 4
      %s153 = int_to_ptr.vmem [resolvable:$true] %s152
      %s154 = sshll.u32 %s3, 4
      %s155 = int_to_ptr.hbm [resolvable:$true] %s154
      %160 = dma.vmem_to_hbm [thread:$0]  %s153, 768, %s155, [#allocation4], 384, 384, 24
    $region29: #{tpu_custom_call.1} parent=1 // pred_fallthru
      _
    // Predicated region
    $region30: #{tpu_custom_call.1} parent=1 // pred_check
      _
    $region31: #{tpu_custom_call.1} parent=1 // pred_check_branch
      %162 = sbr.rel (0) target = $region33
    $region32: #{tpu_custom_call.1} parent=1 // pred_region
      %164 = dma.done [#allocation4], 768
    $region33: #{tpu_custom_call.1} parent=1 // pred_fallthru
      _
    %165 = vsyncpa [#allocation3], 1
    %166 = vsyncpa [#allocation6], 1
    %167 = vsyncpa [#allocation4], 1

</llo_original>
